<compile_context>
chip_gen: v5e
topology: v5e:2x2
jax: 0.10.0
libtpu: 0.0.40
codegen_flags: <defaults>
</compile_context>

<pallas_src>
import jax
import jax.numpy as jnp
import numpy as np
from jax import lax
from jax.experimental import pallas as pl
from jax.experimental.pallas import tpu as pltpu

# Small, module-consistent sizes
B = 2      # batch
F = 16     # feature_size
N = 32     # max_samples
C = 8      # cluster_size
O = 32     # output_dim
EPS = 1e-12     # torch F.normalize eps
BN_EPS = 1e-5   # torch BatchNorm eps


# ---------------------------------------------------------------------------
# Fused kernel: soft-assignment + residual pooling + intra/flat normalization
#               + hidden projection + context gating + final normalization.
# Single invocation, no grid; the whole problem fits in a few vregs.
# ---------------------------------------------------------------------------
def _netvlad_fused_kernel(x_ref, cw_ref, b1_ref, cw2t_ref, hwc_ref, gwf_ref,
                          gb_ref, out_ref):
    cw = cw_ref[...]        # (F, C)   cluster weights with bn1 scale folded in
    b1 = b1_ref[...]        # (C, 1)   bn1 shift as a column vector
    cw2t = cw2t_ref[...]    # (C, F)   cluster_weights2 transposed
    hwc = hwc_ref[...]      # (C*F, O) hidden weights, rows in (c, f)-major order
    gwf = gwf_ref[...]      # (O, O)   gating weights with gating-BN scale folded in
    gb = gb_ref[...]        # (1, O)   gating BN shift

    # --- per-batch soft assignment + residual pooling + normalizations ------
    for b in range(B):                       # static unroll, B is tiny
        x_fn = x_ref[b]                      # (F, N) native layout

        # Soft assignment (transposed): act[c, n] = sum_f cw[f, c] * x[f, n]
        act = lax.dot_general(
            cw, x_fn, (((0,), (0,)), ((), ())),
            preferred_element_type=jnp.float32)                      # (C, N)
        act = act + b1                       # folded eval-mode BN shift

        # Softmax over clusters (axis 0 in this layout)
        act = act - jnp.max(act, axis=0, keepdims=True)
        e = jnp.exp(act)
        p = e * pl.reciprocal(jnp.sum(e, axis=0, keepdims=True), approx=True)

        # a[c, f] = (sum_n p[c, n]) * cluster_weights2[f, c]
        a = jnp.sum(p, axis=1, keepdims=True) * cw2t                 # (C, F)

        # vlad[c, f] = sum_n p[c, n] * x[f, n]   (residual pooling)
        vlad = lax.dot_general(
            p, x_fn, (((1,), (1,)), ((), ())),
            preferred_element_type=jnp.float32)                      # (C, F)
        vlad = vlad - a

        # Intra-normalization: L2 over the feature axis (axis 1 here)
        inv_col = lax.rsqrt(jnp.maximum(
            jnp.sum(vlad * vlad, axis=1, keepdims=True), EPS * EPS))  # (C, 1)
        vlad = vlad * inv_col

        # Flat L2 normalization over all F*C entries (Frobenius norm)
        tot = jnp.sum(jnp.sum(vlad * vlad, axis=1, keepdims=True),
                      axis=0, keepdims=True)                          # (1, 1)
        vlad = vlad * lax.rsqrt(jnp.maximum(tot, EPS * EPS))

        # Hidden projection h = vlad_flat @ hidden_weights, decomposed per
        # cluster so no (C, F) -> (1, C*F) lane relayout is needed:
        #   hwc[c*F + f, :] == hidden_weights[f*C + c, :]
        h = jnp.dot(vlad[0:1, :], hwc[0:F, :],
                    preferred_element_type=jnp.float32)               # (1, O)
        for c in range(1, C):
            h = h + jnp.dot(vlad[c:c + 1, :], hwc[c * F:(c + 1) * F, :],
                            preferred_element_type=jnp.float32)

        # Stage this batch's row in the VMEM-resident output buffer.
        out_ref[pl.ds(b, 1), :] = h

    # --- context gating + final L2 norm, once for the whole (B, O) batch ---
    h_all = out_ref[...]                                              # (B, O)
    g = jnp.dot(h_all, gwf, preferred_element_type=jnp.float32) + gb
    g = pl.reciprocal(1.0 + jnp.exp(-g), approx=True)                 # sigmoid
    h_all = h_all * g
    h_all = h_all * lax.rsqrt(jnp.maximum(
        jnp.sum(h_all * h_all, axis=1, keepdims=True), EPS * EPS))
    out_ref[...] = h_all


# ---------------------------------------------------------------------------
# Wrapper
# ---------------------------------------------------------------------------
@jax.jit
def netvlad_loupe_forward(x_nchw, params):
    # x_nchw: (B, F, N, 1), same as the torch input (batch, feature, samples, 1)
    x_fn = x_nchw.reshape(B, F, N)            # drop trailing size-1 dim (free)

    # Host-side parameter preparation (tiny, fused under jit):
    cw_folded = params["cluster_weights"] * params["bn1_scale"]       # (F, C)
    b1_col = params["bn1_shift"].reshape(C, 1)                        # (C, 1)
    cw2t = params["cluster_weights2"].T                               # (C, F)
    hwc = params["hidden_weights"].reshape(F, C, O).transpose(1, 0, 2)
    hwc = hwc.reshape(C * F, O)                                       # (C*F, O)
    gw_folded = params["gating_weights"] * params["gbn_scale"]        # (O, O)

    vmem = pl.BlockSpec(memory_space=pltpu.MemorySpace.VMEM)
    out = pl.pallas_call(
        _netvlad_fused_kernel,
        out_shape=jax.ShapeDtypeStruct((B, O), jnp.float32),
        in_specs=[vmem] * 7,
        out_specs=vmem,
    )(x_fn, cw_folded, b1_col, cw2t, hwc, gw_folded, params["gbn_shift"])
    return out


# ---------------------------------------------------------------------------
# Deterministic parameter init (shapes mirror NetVLADLoupe.__init__)
# ---------------------------------------------------------------------------
def init_params(key):
    ks = jax.random.split(key, 10)
    cw = jax.random.normal(ks[0], (F, C), jnp.float32) / np.sqrt(F)
    cw2 = jax.random.normal(ks[1], (F, C), jnp.float32) / np.sqrt(F)  # (1,F,C) with leading 1 squeezed
    hw = jax.random.normal(ks[2], (F * C, O), jnp.float32) / np.sqrt(F)
    gw = jax.random.normal(ks[3], (O, O), jnp.float32) / np.sqrt(O)
    # eval-mode BatchNorm1d(cluster_size): fold (gamma, beta, mean, var) to scale/shift
    bn1_gamma = 1.0 + 0.1 * jax.random.normal(ks[4], (C,), jnp.float32)
    bn1_beta = 0.1 * jax.random.normal(ks[5], (C,), jnp.float32)
    bn1_mean = 0.05 * jax.random.normal(ks[6], (C,), jnp.float32)
    bn1_var = 1.0 + 0.1 * jnp.abs(jax.random.normal(ks[7], (C,), jnp.float32))
    bn1_scale = bn1_gamma / jnp.sqrt(bn1_var + BN_EPS)
    bn1_shift = bn1_beta - bn1_mean * bn1_scale
    # GatingContext BatchNorm1d(output_dim), running_mean=0, running_var=1
    gbn_gamma = 1.0 + 0.1 * jax.random.normal(ks[8], (O,), jnp.float32)
    gbn_beta = 0.1 * jax.random.normal(ks[9], (O,), jnp.float32)
    gbn_scale = gbn_gamma / jnp.sqrt(1.0 + BN_EPS)
    gbn_shift = gbn_beta
    # TODO(synk): training-mode BatchNorm (batch statistics) not modeled; inference-mode BN used.
    return dict(
        cluster_weights=cw, cluster_weights2=cw2, hidden_weights=hw,
        gating_weights=gw,
        bn1_scale=bn1_scale.reshape(1, C), bn1_shift=bn1_shift.reshape(1, C),
        gbn_scale=gbn_scale.reshape(1, O), gbn_shift=gbn_shift.reshape(1, O),
    )


# Pure-JAX reference mirroring the PyTorch forward (for a correctness check)
def reference_forward(x_nchw, p):
    x = jnp.transpose(x_nchw, (0, 3, 2, 1)).reshape(B, N, F)
    act = x @ p["cluster_weights"]
    act = act * p["bn1_scale"] + p["bn1_shift"]
    act = jax.nn.softmax(act, axis=-1)
    a_sum = act.sum(axis=1, keepdims=True)
    a = a_sum * p["cluster_weights2"][None]
    vlad = jnp.swapaxes(jnp.einsum("bnc,bnf->bcf", act, x), 1, 2) - a
    vlad = vlad / jnp.maximum(jnp.linalg.norm(vlad, axis=1, keepdims=True), EPS)
    vlad = vlad.reshape(B, F * C)
    vlad = vlad / jnp.maximum(jnp.linalg.norm(vlad, axis=1, keepdims=True), EPS)
    h = vlad @ p["hidden_weights"]
    g = jax.nn.sigmoid((h @ p["gating_weights"]) * p["gbn_scale"] + p["gbn_shift"])
    h = h * g
    return h / jnp.maximum(jnp.linalg.norm(h, axis=1, keepdims=True), EPS)


if __name__ == "__main__":
    key = jax.random.PRNGKey(0)
    pkey, xkey = jax.random.split(key)
    params = init_params(pkey)
    x = jax.random.normal(xkey, (B, F, N, 1), jnp.float32)

    out = jax.block_until_ready(netvlad_loupe_forward(x, params))
    ref = reference_forward(x, params)

    assert out.shape == (B, O), out.shape
    assert bool(jnp.all(jnp.isfinite(out)))
    assert np.allclose(np.asarray(out), np.asarray(ref), atol=2e-2, rtol=2e-2), \
        "Pallas output mismatch vs JAX reference"
    print("KERNEL_OK")
</pallas_src>

<mosaic_0001>
module attributes {stable_mosaic.version = 11 : i64} {
  func.func @_netvlad_fused_kernel(%arg0: memref<2x16x32xf32, #tpu.memory_space<vmem>>, %arg1: memref<16x8xf32, #tpu.memory_space<vmem>>, %arg2: memref<8x1xf32, #tpu.memory_space<vmem>>, %arg3: memref<8x16xf32, #tpu.memory_space<vmem>>, %arg4: memref<128x32xf32, #tpu.memory_space<vmem>>, %arg5: memref<32x32xf32, #tpu.memory_space<vmem>>, %arg6: memref<1x32xf32, #tpu.memory_space<vmem>>, %arg7: memref<2x32xf32, #tpu.memory_space<vmem>>) attributes {dimension_semantics = [], scalar_prefetch = 0 : i64, scratch_operands = 0 : i64, tpu.core_type = #tpu.core_type<tc>} {
    %c0 = arith.constant 0 : index
    %c0_0 = arith.constant 0 : index
    %0 = vector.load %arg1[%c0, %c0_0] : memref<16x8xf32, #tpu.memory_space<vmem>>, vector<16x8xf32>
    %c0_1 = arith.constant 0 : index
    %c0_2 = arith.constant 0 : index
    %1 = vector.load %arg2[%c0_1, %c0_2] : memref<8x1xf32, #tpu.memory_space<vmem>>, vector<8x1xf32>
    %c0_3 = arith.constant 0 : index
    %c0_4 = arith.constant 0 : index
    %2 = vector.load %arg3[%c0_3, %c0_4] : memref<8x16xf32, #tpu.memory_space<vmem>>, vector<8x16xf32>
    %c0_5 = arith.constant 0 : index
    %c0_6 = arith.constant 0 : index
    %3 = vector.load %arg4[%c0_5, %c0_6] : memref<128x32xf32, #tpu.memory_space<vmem>>, vector<128x32xf32>
    %c0_7 = arith.constant 0 : index
    %c0_8 = arith.constant 0 : index
    %4 = vector.load %arg5[%c0_7, %c0_8] : memref<32x32xf32, #tpu.memory_space<vmem>>, vector<32x32xf32>
    %c0_9 = arith.constant 0 : index
    %c0_10 = arith.constant 0 : index
    %5 = vector.load %arg6[%c0_9, %c0_10] : memref<1x32xf32, #tpu.memory_space<vmem>>, vector<1x32xf32>
    %c0_11 = arith.constant 0 : index
    %c0_12 = arith.constant 0 : index
    %c0_13 = arith.constant 0 : index
    %6 = vector.load %arg0[%c0_11, %c0_12, %c0_13] : memref<2x16x32xf32, #tpu.memory_space<vmem>>, vector<1x16x32xf32>
    %7 = vector.shape_cast %6 : vector<1x16x32xf32> to vector<16x32xf32>
    %cst = arith.constant dense<0.000000e+00> : vector<8x32xf32>
    %8 = tpu.matmul %0, %7, %cst {dimension_numbers = #tpu.dot_dimension_numbers<[0], [0], [1], [1], [0, 1, 1, 1], [], []>} : vector<16x8xf32>, vector<16x32xf32>, vector<8x32xf32> -> vector<8x32xf32>
    %9 = vector.broadcast %1 : vector<8x1xf32> to vector<8x32xf32>
    %10 = arith.addf %8, %9 : vector<8x32xf32>
    %cst_14 = arith.constant dense<0xFF800000> : vector<32xf32>
    %11 = vector.multi_reduction <maximumf>, %10, %cst_14 [0] : vector<8x32xf32> to vector<32xf32>
    %12 = vector.shape_cast %11 : vector<32xf32> to vector<1x32xf32>
    %13 = vector.broadcast %12 : vector<1x32xf32> to vector<8x32xf32>
    %14 = arith.subf %10, %13 : vector<8x32xf32>
    %15 = math.exp %14 : vector<8x32xf32>
    %cst_15 = arith.constant dense<0.000000e+00> : vector<32xf32>
    %16 = vector.multi_reduction <add>, %15, %cst_15 [0] : vector<8x32xf32> to vector<32xf32>
    %17 = vector.shape_cast %16 : vector<32xf32> to vector<1x32xf32>
    %18 = tpu.reciprocal %17 {approx = true} : vector<1x32xf32> -> vector<1x32xf32>
    %19 = vector.broadcast %18 : vector<1x32xf32> to vector<8x32xf32>
    %20 = arith.mulf %15, %19 : vector<8x32xf32>
    %cst_16 = arith.constant dense<0.000000e+00> : vector<8xf32>
    %21 = vector.multi_reduction <add>, %20, %cst_16 [1] : vector<8x32xf32> to vector<8xf32>
    %22 = vector.shape_cast %21 : vector<8xf32> to vector<8x1xf32>
    %23 = vector.broadcast %22 : vector<8x1xf32> to vector<8x16xf32>
    %24 = arith.mulf %23, %2 : vector<8x16xf32>
    %cst_17 = arith.constant dense<0.000000e+00> : vector<8x16xf32>
    %25 = tpu.matmul %20, %7, %cst_17 {dimension_numbers = #tpu.dot_dimension_numbers<[1], [1], [0], [0], [0, 0, 1, 0], [], []>} : vector<8x32xf32>, vector<16x32xf32>, vector<8x16xf32> -> vector<8x16xf32>
    %26 = arith.subf %25, %24 : vector<8x16xf32>
    %27 = arith.mulf %26, %26 : vector<8x16xf32>
    %cst_18 = arith.constant dense<0.000000e+00> : vector<8xf32>
    %28 = vector.multi_reduction <add>, %27, %cst_18 [1] : vector<8x16xf32> to vector<8xf32>
    %29 = vector.shape_cast %28 : vector<8xf32> to vector<8x1xf32>
    %cst_19 = arith.constant 1.000000e-24 : f32
    %30 = vector.broadcast %cst_19 : f32 to vector<8x1xf32>
    %31 = arith.maximumf %29, %30 : vector<8x1xf32>
    %32 = math.rsqrt %31 : vector<8x1xf32>
    %33 = vector.broadcast %32 : vector<8x1xf32> to vector<8x16xf32>
    %34 = arith.mulf %26, %33 : vector<8x16xf32>
    %35 = arith.mulf %34, %34 : vector<8x16xf32>
    %cst_20 = arith.constant dense<0.000000e+00> : vector<8xf32>
    %36 = vector.multi_reduction <add>, %35, %cst_20 [1] : vector<8x16xf32> to vector<8xf32>
    %37 = vector.shape_cast %36 : vector<8xf32> to vector<8x1xf32>
    %cst_21 = arith.constant dense<0.000000e+00> : vector<1xf32>
    %38 = vector.multi_reduction <add>, %37, %cst_21 [0] : vector<8x1xf32> to vector<1xf32>
    %39 = vector.shape_cast %38 : vector<1xf32> to vector<1x1xf32>
    %cst_22 = arith.constant 1.000000e-24 : f32
    %40 = vector.broadcast %cst_22 : f32 to vector<1x1xf32>
    %41 = arith.maximumf %39, %40 : vector<1x1xf32>
    %42 = math.rsqrt %41 : vector<1x1xf32>
    %43 = vector.broadcast %42 : vector<1x1xf32> to vector<8x16xf32>
    %44 = arith.mulf %34, %43 : vector<8x16xf32>
    %45 = vector.extract_strided_slice %44 {offsets = [0, 0], sizes = [1, 16], strides = [1, 1]} : vector<8x16xf32> to vector<1x16xf32>
    %46 = vector.extract_strided_slice %3 {offsets = [0, 0], sizes = [16, 32], strides = [1, 1]} : vector<128x32xf32> to vector<16x32xf32>
    %cst_23 = arith.constant dense<0.000000e+00> : vector<1x32xf32>
    %47 = tpu.matmul %45, %46, %cst_23 {dimension_numbers = #tpu.dot_dimension_numbers<[1], [0], [0], [1], [0, 0, 1, 1], [], []>} : vector<1x16xf32>, vector<16x32xf32>, vector<1x32xf32> -> vector<1x32xf32>
    %48 = vector.extract_strided_slice %44 {offsets = [1, 0], sizes = [1, 16], strides = [1, 1]} : vector<8x16xf32> to vector<1x16xf32>
    %49 = vector.extract_strided_slice %3 {offsets = [16, 0], sizes = [16, 32], strides = [1, 1]} : vector<128x32xf32> to vector<16x32xf32>
    %cst_24 = arith.constant dense<0.000000e+00> : vector<1x32xf32>
    %50 = tpu.matmul %48, %49, %cst_24 {dimension_numbers = #tpu.dot_dimension_numbers<[1], [0], [0], [1], [0, 0, 1, 1], [], []>} : vector<1x16xf32>, vector<16x32xf32>, vector<1x32xf32> -> vector<1x32xf32>
    %51 = arith.addf %47, %50 : vector<1x32xf32>
    %52 = vector.extract_strided_slice %44 {offsets = [2, 0], sizes = [1, 16], strides = [1, 1]} : vector<8x16xf32> to vector<1x16xf32>
    %53 = vector.extract_strided_slice %3 {offsets = [32, 0], sizes = [16, 32], strides = [1, 1]} : vector<128x32xf32> to vector<16x32xf32>
    %cst_25 = arith.constant dense<0.000000e+00> : vector<1x32xf32>
    %54 = tpu.matmul %52, %53, %cst_25 {dimension_numbers = #tpu.dot_dimension_numbers<[1], [0], [0], [1], [0, 0, 1, 1], [], []>} : vector<1x16xf32>, vector<16x32xf32>, vector<1x32xf32> -> vector<1x32xf32>
    %55 = arith.addf %51, %54 : vector<1x32xf32>
    %56 = vector.extract_strided_slice %44 {offsets = [3, 0], sizes = [1, 16], strides = [1, 1]} : vector<8x16xf32> to vector<1x16xf32>
    %57 = vector.extract_strided_slice %3 {offsets = [48, 0], sizes = [16, 32], strides = [1, 1]} : vector<128x32xf32> to vector<16x32xf32>
    %cst_26 = arith.constant dense<0.000000e+00> : vector<1x32xf32>
    %58 = tpu.matmul %56, %57, %cst_26 {dimension_numbers = #tpu.dot_dimension_numbers<[1], [0], [0], [1], [0, 0, 1, 1], [], []>} : vector<1x16xf32>, vector<16x32xf32>, vector<1x32xf32> -> vector<1x32xf32>
    %59 = arith.addf %55, %58 : vector<1x32xf32>
    %60 = vector.extract_strided_slice %44 {offsets = [4, 0], sizes = [1, 16], strides = [1, 1]} : vector<8x16xf32> to vector<1x16xf32>
    %61 = vector.extract_strided_slice %3 {offsets = [64, 0], sizes = [16, 32], strides = [1, 1]} : vector<128x32xf32> to vector<16x32xf32>
    %cst_27 = arith.constant dense<0.000000e+00> : vector<1x32xf32>
    %62 = tpu.matmul %60, %61, %cst_27 {dimension_numbers = #tpu.dot_dimension_numbers<[1], [0], [0], [1], [0, 0, 1, 1], [], []>} : vector<1x16xf32>, vector<16x32xf32>, vector<1x32xf32> -> vector<1x32xf32>
    %63 = arith.addf %59, %62 : vector<1x32xf32>
    %64 = vector.extract_strided_slice %44 {offsets = [5, 0], sizes = [1, 16], strides = [1, 1]} : vector<8x16xf32> to vector<1x16xf32>
    %65 = vector.extract_strided_slice %3 {offsets = [80, 0], sizes = [16, 32], strides = [1, 1]} : vector<128x32xf32> to vector<16x32xf32>
    %cst_28 = arith.constant dense<0.000000e+00> : vector<1x32xf32>
    %66 = tpu.matmul %64, %65, %cst_28 {dimension_numbers = #tpu.dot_dimension_numbers<[1], [0], [0], [1], [0, 0, 1, 1], [], []>} : vector<1x16xf32>, vector<16x32xf32>, vector<1x32xf32> -> vector<1x32xf32>
    %67 = arith.addf %63, %66 : vector<1x32xf32>
    %68 = vector.extract_strided_slice %44 {offsets = [6, 0], sizes = [1, 16], strides = [1, 1]} : vector<8x16xf32> to vector<1x16xf32>
    %69 = vector.extract_strided_slice %3 {offsets = [96, 0], sizes = [16, 32], strides = [1, 1]} : vector<128x32xf32> to vector<16x32xf32>
    %cst_29 = arith.constant dense<0.000000e+00> : vector<1x32xf32>
    %70 = tpu.matmul %68, %69, %cst_29 {dimension_numbers = #tpu.dot_dimension_numbers<[1], [0], [0], [1], [0, 0, 1, 1], [], []>} : vector<1x16xf32>, vector<16x32xf32>, vector<1x32xf32> -> vector<1x32xf32>
    %71 = arith.addf %67, %70 : vector<1x32xf32>
    %72 = vector.extract_strided_slice %44 {offsets = [7, 0], sizes = [1, 16], strides = [1, 1]} : vector<8x16xf32> to vector<1x16xf32>
    %73 = vector.extract_strided_slice %3 {offsets = [112, 0], sizes = [16, 32], strides = [1, 1]} : vector<128x32xf32> to vector<16x32xf32>
    %cst_30 = arith.constant dense<0.000000e+00> : vector<1x32xf32>
    %74 = tpu.matmul %72, %73, %cst_30 {dimension_numbers = #tpu.dot_dimension_numbers<[1], [0], [0], [1], [0, 0, 1, 1], [], []>} : vector<1x16xf32>, vector<16x32xf32>, vector<1x32xf32> -> vector<1x32xf32>
    %75 = arith.addf %71, %74 : vector<1x32xf32>
    %c0_31 = arith.constant 0 : index
    %c0_32 = arith.constant 0 : index
    %76 = vector.load %arg7[%c0_31, %c0_32] : memref<2x32xf32, #tpu.memory_space<vmem>>, vector<1x32xf32>
    tpu.vector_store %arg7[%c0_31, %c0_32], %75 {strides = array<i32>} : memref<2x32xf32, #tpu.memory_space<vmem>>, vector<1x32xf32>,
    %c1 = arith.constant 1 : index
    %c0_33 = arith.constant 0 : index
    %c0_34 = arith.constant 0 : index
    %77 = vector.load %arg0[%c1, %c0_33, %c0_34] : memref<2x16x32xf32, #tpu.memory_space<vmem>>, vector<1x16x32xf32>
    %78 = vector.shape_cast %77 : vector<1x16x32xf32> to vector<16x32xf32>
    %cst_35 = arith.constant dense<0.000000e+00> : vector<8x32xf32>
    %79 = tpu.matmul %0, %78, %cst_35 {dimension_numbers = #tpu.dot_dimension_numbers<[0], [0], [1], [1], [0, 1, 1, 1], [], []>} : vector<16x8xf32>, vector<16x32xf32>, vector<8x32xf32> -> vector<8x32xf32>
    %80 = vector.broadcast %1 : vector<8x1xf32> to vector<8x32xf32>
    %81 = arith.addf %79, %80 : vector<8x32xf32>
    %cst_36 = arith.constant dense<0xFF800000> : vector<32xf32>
    %82 = vector.multi_reduction <maximumf>, %81, %cst_36 [0] : vector<8x32xf32> to vector<32xf32>
    %83 = vector.shape_cast %82 : vector<32xf32> to vector<1x32xf32>
    %84 = vector.broadcast %83 : vector<1x32xf32> to vector<8x32xf32>
    %85 = arith.subf %81, %84 : vector<8x32xf32>
    %86 = math.exp %85 : vector<8x32xf32>
    %cst_37 = arith.constant dense<0.000000e+00> : vector<32xf32>
    %87 = vector.multi_reduction <add>, %86, %cst_37 [0] : vector<8x32xf32> to vector<32xf32>
    %88 = vector.shape_cast %87 : vector<32xf32> to vector<1x32xf32>
    %89 = tpu.reciprocal %88 {approx = true} : vector<1x32xf32> -> vector<1x32xf32>
    %90 = vector.broadcast %89 : vector<1x32xf32> to vector<8x32xf32>
    %91 = arith.mulf %86, %90 : vector<8x32xf32>
    %cst_38 = arith.constant dense<0.000000e+00> : vector<8xf32>
    %92 = vector.multi_reduction <add>, %91, %cst_38 [1] : vector<8x32xf32> to vector<8xf32>
    %93 = vector.shape_cast %92 : vector<8xf32> to vector<8x1xf32>
    %94 = vector.broadcast %93 : vector<8x1xf32> to vector<8x16xf32>
    %95 = arith.mulf %94, %2 : vector<8x16xf32>
    %cst_39 = arith.constant dense<0.000000e+00> : vector<8x16xf32>
    %96 = tpu.matmul %91, %78, %cst_39 {dimension_numbers = #tpu.dot_dimension_numbers<[1], [1], [0], [0], [0, 0, 1, 0], [], []>} : vector<8x32xf32>, vector<16x32xf32>, vector<8x16xf32> -> vector<8x16xf32>
    %97 = arith.subf %96, %95 : vector<8x16xf32>
    %98 = arith.mulf %97, %97 : vector<8x16xf32>
    %cst_40 = arith.constant dense<0.000000e+00> : vector<8xf32>
    %99 = vector.multi_reduction <add>, %98, %cst_40 [1] : vector<8x16xf32> to vector<8xf32>
    %100 = vector.shape_cast %99 : vector<8xf32> to vector<8x1xf32>
    %cst_41 = arith.constant 1.000000e-24 : f32
    %101 = vector.broadcast %cst_41 : f32 to vector<8x1xf32>
    %102 = arith.maximumf %100, %101 : vector<8x1xf32>
    %103 = math.rsqrt %102 : vector<8x1xf32>
    %104 = vector.broadcast %103 : vector<8x1xf32> to vector<8x16xf32>
    %105 = arith.mulf %97, %104 : vector<8x16xf32>
    %106 = arith.mulf %105, %105 : vector<8x16xf32>
    %cst_42 = arith.constant dense<0.000000e+00> : vector<8xf32>
    %107 = vector.multi_reduction <add>, %106, %cst_42 [1] : vector<8x16xf32> to vector<8xf32>
    %108 = vector.shape_cast %107 : vector<8xf32> to vector<8x1xf32>
    %cst_43 = arith.constant dense<0.000000e+00> : vector<1xf32>
    %109 = vector.multi_reduction <add>, %108, %cst_43 [0] : vector<8x1xf32> to vector<1xf32>
    %110 = vector.shape_cast %109 : vector<1xf32> to vector<1x1xf32>
    %cst_44 = arith.constant 1.000000e-24 : f32
    %111 = vector.broadcast %cst_44 : f32 to vector<1x1xf32>
    %112 = arith.maximumf %110, %111 : vector<1x1xf32>
    %113 = math.rsqrt %112 : vector<1x1xf32>
    %114 = vector.broadcast %113 : vector<1x1xf32> to vector<8x16xf32>
    %115 = arith.mulf %105, %114 : vector<8x16xf32>
    %116 = vector.extract_strided_slice %115 {offsets = [0, 0], sizes = [1, 16], strides = [1, 1]} : vector<8x16xf32> to vector<1x16xf32>
    %117 = vector.extract_strided_slice %3 {offsets = [0, 0], sizes = [16, 32], strides = [1, 1]} : vector<128x32xf32> to vector<16x32xf32>
    %cst_45 = arith.constant dense<0.000000e+00> : vector<1x32xf32>
    %118 = tpu.matmul %116, %117, %cst_45 {dimension_numbers = #tpu.dot_dimension_numbers<[1], [0], [0], [1], [0, 0, 1, 1], [], []>} : vector<1x16xf32>, vector<16x32xf32>, vector<1x32xf32> -> vector<1x32xf32>
    %119 = vector.extract_strided_slice %115 {offsets = [1, 0], sizes = [1, 16], strides = [1, 1]} : vector<8x16xf32> to vector<1x16xf32>
    %120 = vector.extract_strided_slice %3 {offsets = [16, 0], sizes = [16, 32], strides = [1, 1]} : vector<128x32xf32> to vector<16x32xf32>
    %cst_46 = arith.constant dense<0.000000e+00> : vector<1x32xf32>
    %121 = tpu.matmul %119, %120, %cst_46 {dimension_numbers = #tpu.dot_dimension_numbers<[1], [0], [0], [1], [0, 0, 1, 1], [], []>} : vector<1x16xf32>, vector<16x32xf32>, vector<1x32xf32> -> vector<1x32xf32>
    %122 = arith.addf %118, %121 : vector<1x32xf32>
    %123 = vector.extract_strided_slice %115 {offsets = [2, 0], sizes = [1, 16], strides = [1, 1]} : vector<8x16xf32> to vector<1x16xf32>
    %124 = vector.extract_strided_slice %3 {offsets = [32, 0], sizes = [16, 32], strides = [1, 1]} : vector<128x32xf32> to vector<16x32xf32>
    %cst_47 = arith.constant dense<0.000000e+00> : vector<1x32xf32>
    %125 = tpu.matmul %123, %124, %cst_47 {dimension_numbers = #tpu.dot_dimension_numbers<[1], [0], [0], [1], [0, 0, 1, 1], [], []>} : vector<1x16xf32>, vector<16x32xf32>, vector<1x32xf32> -> vector<1x32xf32>
    %126 = arith.addf %122, %125 : vector<1x32xf32>
    %127 = vector.extract_strided_slice %115 {offsets = [3, 0], sizes = [1, 16], strides = [1, 1]} : vector<8x16xf32> to vector<1x16xf32>
    %128 = vector.extract_strided_slice %3 {offsets = [48, 0], sizes = [16, 32], strides = [1, 1]} : vector<128x32xf32> to vector<16x32xf32>
    %cst_48 = arith.constant dense<0.000000e+00> : vector<1x32xf32>
    %129 = tpu.matmul %127, %128, %cst_48 {dimension_numbers = #tpu.dot_dimension_numbers<[1], [0], [0], [1], [0, 0, 1, 1], [], []>} : vector<1x16xf32>, vector<16x32xf32>, vector<1x32xf32> -> vector<1x32xf32>
    %130 = arith.addf %126, %129 : vector<1x32xf32>
    %131 = vector.extract_strided_slice %115 {offsets = [4, 0], sizes = [1, 16], strides = [1, 1]} : vector<8x16xf32> to vector<1x16xf32>
    %132 = vector.extract_strided_slice %3 {offsets = [64, 0], sizes = [16, 32], strides = [1, 1]} : vector<128x32xf32> to vector<16x32xf32>
    %cst_49 = arith.constant dense<0.000000e+00> : vector<1x32xf32>
    %133 = tpu.matmul %131, %132, %cst_49 {dimension_numbers = #tpu.dot_dimension_numbers<[1], [0], [0], [1], [0, 0, 1, 1], [], []>} : vector<1x16xf32>, vector<16x32xf32>, vector<1x32xf32> -> vector<1x32xf32>
    %134 = arith.addf %130, %133 : vector<1x32xf32>
    %135 = vector.extract_strided_slice %115 {offsets = [5, 0], sizes = [1, 16], strides = [1, 1]} : vector<8x16xf32> to vector<1x16xf32>
    %136 = vector.extract_strided_slice %3 {offsets = [80, 0], sizes = [16, 32], strides = [1, 1]} : vector<128x32xf32> to vector<16x32xf32>
    %cst_50 = arith.constant dense<0.000000e+00> : vector<1x32xf32>
    %137 = tpu.matmul %135, %136, %cst_50 {dimension_numbers = #tpu.dot_dimension_numbers<[1], [0], [0], [1], [0, 0, 1, 1], [], []>} : vector<1x16xf32>, vector<16x32xf32>, vector<1x32xf32> -> vector<1x32xf32>
    %138 = arith.addf %134, %137 : vector<1x32xf32>
    %139 = vector.extract_strided_slice %115 {offsets = [6, 0], sizes = [1, 16], strides = [1, 1]} : vector<8x16xf32> to vector<1x16xf32>
    %140 = vector.extract_strided_slice %3 {offsets = [96, 0], sizes = [16, 32], strides = [1, 1]} : vector<128x32xf32> to vector<16x32xf32>
    %cst_51 = arith.constant dense<0.000000e+00> : vector<1x32xf32>
    %141 = tpu.matmul %139, %140, %cst_51 {dimension_numbers = #tpu.dot_dimension_numbers<[1], [0], [0], [1], [0, 0, 1, 1], [], []>} : vector<1x16xf32>, vector<16x32xf32>, vector<1x32xf32> -> vector<1x32xf32>
    %142 = arith.addf %138, %141 : vector<1x32xf32>
    %143 = vector.extract_strided_slice %115 {offsets = [7, 0], sizes = [1, 16], strides = [1, 1]} : vector<8x16xf32> to vector<1x16xf32>
    %144 = vector.extract_strided_slice %3 {offsets = [112, 0], sizes = [16, 32], strides = [1, 1]} : vector<128x32xf32> to vector<16x32xf32>
    %cst_52 = arith.constant dense<0.000000e+00> : vector<1x32xf32>
    %145 = tpu.matmul %143, %144, %cst_52 {dimension_numbers = #tpu.dot_dimension_numbers<[1], [0], [0], [1], [0, 0, 1, 1], [], []>} : vector<1x16xf32>, vector<16x32xf32>, vector<1x32xf32> -> vector<1x32xf32>
    %146 = arith.addf %142, %145 : vector<1x32xf32>
    %c1_53 = arith.constant 1 : index
    %c0_54 = arith.constant 0 : index
    %147 = vector.load %arg7[%c1_53, %c0_54] : memref<2x32xf32, #tpu.memory_space<vmem>>, vector<1x32xf32>
    tpu.vector_store %arg7[%c1_53, %c0_54], %146 {strides = array<i32>} : memref<2x32xf32, #tpu.memory_space<vmem>>, vector<1x32xf32>,
    %c0_55 = arith.constant 0 : index
    %c0_56 = arith.constant 0 : index
    %148 = vector.load %arg7[%c0_55, %c0_56] : memref<2x32xf32, #tpu.memory_space<vmem>>, vector<2x32xf32>
    %cst_57 = arith.constant dense<0.000000e+00> : vector<2x32xf32>
    %149 = tpu.matmul %148, %4, %cst_57 {dimension_numbers = #tpu.dot_dimension_numbers<[1], [0], [0], [1], [0, 0, 1, 1], [], []>} : vector<2x32xf32>, vector<32x32xf32>, vector<2x32xf32> -> vector<2x32xf32>
    %150 = vector.broadcast %5 : vector<1x32xf32> to vector<2x32xf32>
    %151 = arith.addf %149, %150 : vector<2x32xf32>
    %cst_58 = arith.constant 0.000000e+00 : f32
    %152 = vector.broadcast %cst_58 : f32 to vector<2x32xf32>
    %153 = arith.subf %152, %151 : vector<2x32xf32>
    %154 = math.exp %153 : vector<2x32xf32>
    %cst_59 = arith.constant 1.000000e+00 : f32
    %155 = vector.broadcast %cst_59 : f32 to vector<2x32xf32>
    %156 = arith.addf %155, %154 : vector<2x32xf32>
    %157 = tpu.reciprocal %156 {approx = true} : vector<2x32xf32> -> vector<2x32xf32>
    %158 = arith.mulf %148, %157 : vector<2x32xf32>
    %159 = arith.mulf %158, %158 : vector<2x32xf32>
    %cst_60 = arith.constant dense<0.000000e+00> : vector<2xf32>
    %160 = vector.multi_reduction <add>, %159, %cst_60 [1] : vector<2x32xf32> to vector<2xf32>
    %161 = vector.shape_cast %160 : vector<2xf32> to vector<2x1xf32>
    %cst_61 = arith.constant 1.000000e-24 : f32
    %162 = vector.broadcast %cst_61 : f32 to vector<2x1xf32>
    %163 = arith.maximumf %161, %162 : vector<2x1xf32>
    %164 = math.rsqrt %163 : vector<2x1xf32>
    %165 = vector.broadcast %164 : vector<2x1xf32> to vector<2x32xf32>
    %166 = arith.mulf %158, %165 : vector<2x32xf32>
    %c0_62 = arith.constant 0 : index
    %c0_63 = arith.constant 0 : index
    %167 = vector.load %arg7[%c0_62, %c0_63] : memref<2x32xf32, #tpu.memory_space<vmem>>, vector<2x32xf32>
    tpu.vector_store %arg7[%c0_62, %c0_63], %166 {strides = array<i32>} : memref<2x32xf32, #tpu.memory_space<vmem>>, vector<2x32xf32>,
    return
  }
}

</mosaic_0001>

<llo_original>
// kernel: netvlad_loupe_forward.1
$region0: #{netvlad_loupe_forward.1}
  #allocation0 [shape = 'u32[]', space=smem, size = 0x4, offset = 0x4, fixed_abs, tag = 'smem constant byte address 0x4 - core index']
  #allocation1 [shape = 'u32[72,128]{1,0:T(1,128)}', space=vmem, size = 0x9000, scoped, tag = 'internal scratch']
  %s0 = inlined_call_operand.vmem [shape: f32[2,16,32], index: 0, kind: input, shape index: {}]
  %s1 = inlined_call_operand.vmem [shape: f32[16,8], index: 1, kind: input, shape index: {}]
  %s2 = inlined_call_operand.vmem [shape: f32[8,1], index: 2, kind: input, shape index: {}]
  %s3 = inlined_call_operand.vmem [shape: f32[8,16], index: 3, kind: input, shape index: {}]
  %s4 = inlined_call_operand.vmem [shape: f32[128,32], index: 4, kind: input, shape index: {}]
  %s5 = inlined_call_operand.vmem [shape: f32[32,32], index: 5, kind: input, shape index: {}]
  %s6 = inlined_call_operand.vmem [shape: f32[1,32], index: 6, kind: input, shape index: {}]
  %s7 = inlined_call_operand.hbm [shape: f32[2,32], index: 7, kind: output, shape index: {}]
  %s8 = sld [smem:[#allocation0]]
  $region38: #{netvlad_loupe_forward.1} parent=0
    _
  %s10 = ssub.s32 1, %s8
  %s11 = scalar_select 0, %s10, %s8
  $region1: #{netvlad_loupe_forward.1} parent=0
    #allocation2 [shape = 'u8[1024]{0}', space=vmem, size = 0x400, scoped, tag = 'output window, operand 0, single buffered']
    #allocation3 [shape = 's32[1]{0}', space=sflag, size = 0x4, scoped, tag = 'scoped memory for netvlad_loupe_forward.1']
    %12 = vsyncpa [#allocation3], 0
    // Predicated region
    $region2: #{netvlad_loupe_forward.1} parent=1 // pred_check
      _
    $region3: #{netvlad_loupe_forward.1} parent=1 // pred_check_branch
      %14 = sbr.rel (0) target = $region5
    $region4: #{netvlad_loupe_forward.1} parent=1 // pred_region
      _
    $region5: #{netvlad_loupe_forward.1} parent=1 // pred_fallthru
      _
    // Predicated region
    $region6: #{netvlad_loupe_forward.1} parent=1 // pred_check
      _
    $region7: #{netvlad_loupe_forward.1} parent=1 // pred_check_branch
      %16 = sbr.rel (0) target = $region9
    $region8: #{netvlad_loupe_forward.1} parent=1 // pred_region
      _
    $region9: #{netvlad_loupe_forward.1} parent=1 // pred_fallthru
      _
    // Predicated region
    $region10: #{netvlad_loupe_forward.1} parent=1 // pred_check
      _
    $region11: #{netvlad_loupe_forward.1} parent=1 // pred_check_branch
      %18 = sbr.rel (0) target = $region13
    $region12: #{netvlad_loupe_forward.1} parent=1 // pred_region
      _
    $region13: #{netvlad_loupe_forward.1} parent=1 // pred_fallthru
      _
    // Predicated region
    $region14: #{netvlad_loupe_forward.1} parent=1 // pred_check
      _
    $region15: #{netvlad_loupe_forward.1} parent=1 // pred_check_branch
      %20 = sbr.rel (0) target = $region17
    $region16: #{netvlad_loupe_forward.1} parent=1 // pred_region
      _
    $region17: #{netvlad_loupe_forward.1} parent=1 // pred_fallthru
      _
    // Predicated region
    $region18: #{netvlad_loupe_forward.1} parent=1 // pred_check
      _
    $region19: #{netvlad_loupe_forward.1} parent=1 // pred_check_branch
      %22 = sbr.rel (0) target = $region21
    $region20: #{netvlad_loupe_forward.1} parent=1 // pred_region
      _
    $region21: #{netvlad_loupe_forward.1} parent=1 // pred_fallthru
      _
    // Predicated region
    $region22: #{netvlad_loupe_forward.1} parent=1 // pred_check
      _
    $region23: #{netvlad_loupe_forward.1} parent=1 // pred_check_branch
      %24 = sbr.rel (0) target = $region25
    $region24: #{netvlad_loupe_forward.1} parent=1 // pred_region
      _
    $region25: #{netvlad_loupe_forward.1} parent=1 // pred_fallthru
      _
    // Predicated region
    $region26: #{netvlad_loupe_forward.1} parent=1 // pred_check
      _
    $region27: #{netvlad_loupe_forward.1} parent=1 // pred_check_branch
      %26 = sbr.rel (0) target = $region29
    $region28: #{netvlad_loupe_forward.1} parent=1 // pred_region
      _
    $region29: #{netvlad_loupe_forward.1} parent=1 // pred_fallthru
      _
    %v27 = vld [vmem:[%s1] sm:$0xff]
    %v28 = vld [vmem:[%s1 + $0x8] sm:$0xff]
    %v29 = vld [vmem:[%s2] sm:$0xff]
    %v30 = vld [vmem:[%s3] sm:$0xff]
    %v31 = vld [vmem:[%s4] sm:$0xff]
    %v32 = vld [vmem:[%s4 + $0x8] sm:$0xff]
    %v33 = vld [vmem:[%s4 + $0x10] sm:$0xff]
    %v34 = vld [vmem:[%s4 + $0x18] sm:$0xff]
    %v35 = vld [vmem:[%s4 + $0x20] sm:$0xff]
    %v36 = vld [vmem:[%s4 + $0x28] sm:$0xff]
    %v37 = vld [vmem:[%s4 + $0x30] sm:$0xff]
    %v38 = vld [vmem:[%s4 + $0x38] sm:$0xff]
    %v39 = vld [vmem:[%s4 + $0x40] sm:$0xff]
    %v40 = vld [vmem:[%s4 + $0x48] sm:$0xff]
    %v41 = vld [vmem:[%s4 + $0x50] sm:$0xff]
    %v42 = vld [vmem:[%s4 + $0x58] sm:$0xff]
    %v43 = vld [vmem:[%s4 + $0x60] sm:$0xff]
    %v44 = vld [vmem:[%s4 + $0x68] sm:$0xff]
    %v45 = vld [vmem:[%s4 + $0x70] sm:$0xff]
    %v46 = vld [vmem:[%s4 + $0x78] sm:$0xff]
    %v47 = vld [vmem:[%s5] sm:$0xff]
    %v48 = vld [vmem:[%s5 + $0x8] sm:$0xff]
    %v49 = vld [vmem:[%s5 + $0x10] sm:$0xff]
    %v50 = vld [vmem:[%s5 + $0x18] sm:$0xff]
    %v51 = vld [vmem:[%s6] sm:$0x1]
    %v52 = vld [vmem:[%s0] sm:$0xff]
    %v53 = vld [vmem:[%s0 + $0x8] sm:$0xff]
    %55 = vset.pattern.permute.xlu0 0
    %56 = vperm.xlu0 %55, %v29
    %v57 = vpop.permute.xlu0 %56
    %59 = vxpose.xlu0.b32.start [1/16] %v27, 128
    %60 = vxpose.xlu0.b32.cont [2/16] %v28, 128
    %61 = vxpose.xlu0.b32.cont [3/16] 0.0, 128
    %62 = vxpose.xlu0.b32.cont [4/16] 0.0, 128
    %63 = vxpose.xlu0.b32.cont [5/16] 0.0, 128
    %64 = vxpose.xlu0.b32.cont [6/16] 0.0, 128
    %65 = vxpose.xlu0.b32.cont [7/16] 0.0, 128
    %66 = vxpose.xlu0.b32.cont [8/16] 0.0, 128
    %67 = vxpose.xlu0.b32.cont [9/16] 0.0, 128
    %68 = vxpose.xlu0.b32.cont [10/16] 0.0, 128
    %69 = vxpose.xlu0.b32.cont [11/16] 0.0, 128
    %70 = vxpose.xlu0.b32.cont [12/16] 0.0, 128
    %71 = vxpose.xlu0.b32.cont [13/16] 0.0, 128
    %72 = vxpose.xlu0.b32.cont [14/16] 0.0, 128
    %73 = vxpose.xlu0.b32.cont [15/16] 0.0, 128
    %74 = vxpose.xlu0.b32.end [16/16] 0.0, 128
    %v75 = vpop.trf.xlu0
    %v76 = vpop.trf.xlu0
    %v77 = vpop.trf.xlu0
    %v78 = vpop.trf.xlu0
    %v79 = vpop.trf.xlu0
    %v80 = vpop.trf.xlu0
    %v81 = vpop.trf.xlu0
    %v82 = vpop.trf.xlu0
    %v83 = vpop.trf.xlu0
    %v84 = vpop.trf.xlu0
    %v85 = vpop.trf.xlu0
    %v86 = vpop.trf.xlu0
    %v87 = vpop.trf.xlu0
    %v88 = vpop.trf.xlu0
    %v89 = vpop.trf.xlu0
    %v90 = vpop.trf.xlu0
    %vm91 = vcmask 130048
    %v93 = vsel %vm91, %v75, 0
    %95 = vmatpush.msra.mxu0 0.0
    %96 = vmatpush.msra.mxu0 0.0
    %97 = vmatpush.msra.mxu0 0.0
    %98 = vmatpush.msra.mxu0 0.0
    %99 = vmatpush.msra.mxu0 0.0
    %100 = vmatpush.msra.mxu0 0.0
    %101 = vmatpush.msra.mxu0 0.0
    %102 = vmatpush.msra.mxu0 0.0
    %103 = vmatpush.msra.mxu0 0.0
    %104 = vmatpush.msra.mxu0 0.0
    %105 = vmatpush.msra.mxu0 0.0
    %106 = vmatpush.msra.mxu0 0.0
    %107 = vmatpush.msra.mxu0 0.0
    %108 = vmatpush.msra.mxu0 0.0
    %109 = vmatpush.msra.mxu0 %v53
    %110 = vmatpush.msra.mxu0 %v52
    %111 = vmatmul.f32.gmra.mxu0 %v93
    %v112 = vpop.f32.mrf.mxu0
    %v113 = vadd.f32 %v57, %v112
    %114 = vdwg.mxu0
    %vm115 = vcmask 261120
    %v116 = vsel %vm115, %v113, -inf
    %v117 = vrot.slane %v116, 4
    %v118 = vmax.f32 %v116, %v117
    %v119 = vrot.slane %v118, 2
    %v120 = vmax.f32 %v118, %v119
    %v121 = vrot.slane %v120, 1
    %v122 = vmax.f32 %v120, %v121
    %v123 = vsub.f32 %v113, %v122
    %v124 = vmul.f32 %v123, 1.442695
    %v125 = vpow.pop %v124
    %v126 = vsel %vm115, %v125, 0.0
    %v127 = vrot.slane %v126, 4
    %v128 = vadd.f32 %v126, %v127
    %v129 = vrot.slane %v128, 2
    %v130 = vadd.f32 %v128, %v129
    %v131 = vrot.slane %v130, 1
    %v132 = vadd.f32 %v130, %v131
    %v133 = vrcp.pop %v132
    %v134 = vmul.f32 %v125, %v133
    %v135 = vsel %vm115, %v134, 0.0
    %136 = vadd.xlane.f32.xlu0 %v135
    %v137 = vpop.xlane.xlu0 %136
    %v138 = vmul.f32 %v137, %v30
    %v140 = vsel %vm115, %v134, 0
    %v143 = vsel %vm115, %v52, 0
    %v146 = vsel %vm115, %v53, 0
    %148 = vmatpush.xpose.msra.mxu0 0.0
    %149 = vmatpush.xpose.msra.mxu0 0.0
    %150 = vmatpush.xpose.msra.mxu0 0.0
    %151 = vmatpush.xpose.msra.mxu0 0.0
    %152 = vmatpush.xpose.msra.mxu0 0.0
    %153 = vmatpush.xpose.msra.mxu0 0.0
    %154 = vmatpush.xpose.msra.mxu0 0.0
    %155 = vmatpush.xpose.msra.mxu0 0.0
    %156 = vmatpush.xpose.msra.mxu0 0.0
    %157 = vmatpush.xpose.msra.mxu0 0.0
    %158 = vmatpush.xpose.msra.mxu0 0.0
    %159 = vmatpush.xpose.msra.mxu0 0.0
    %160 = vmatpush.xpose.msra.mxu0 0.0
    %161 = vmatpush.xpose.msra.mxu0 0.0
    %162 = vmatpush.xpose.msra.mxu0 %v146
    %163 = vmatpush.xpose.msra.mxu0 %v143
    %164 = vmatmul.f32.gmra.mxu0 %v140
    %v165 = vpop.f32.mrf.mxu0
    %v166 = vadd.f32 0.0, %v165
    %167 = vdwg.mxu0
    %v168 = vsub.f32 %v166, %v138
    %v169 = vmul.f32 %v168, %v168
    %v170 = vsel %vm91, %v169, 0.0
    %171 = vadd.xlane.f32.xlu0 %v170
    %v172 = vpop.xlane.xlu0 %171
    %v173 = vmax.f32 %v172, 1e-24
    %v174 = vrsqrt.pop %v173
    %v175 = vmul.f32 %v174, %v173
    %v176 = vmul.f32 %v175, %v174
    %v177 = vmul.f32 0.5, %v176
    %v178 = vsub.f32 1.5, %v177
    %v179 = vmul.f32 %v174, %v178
    %vm180 = vweird.f32 %v173
    %vm181 = vweird.f32 %v174
    %vm182 = vmor %vm180, %vm181
    %v183 = vsel %vm182, %v174, %v179
    %v184 = vmul.f32 %v168, %v183
    %v185 = vmul.f32 %v184, %v184
    %v186 = vsel %vm91, %v185, 0.0
    %187 = vadd.xlane.f32.xlu0 %v186
    %v188 = vpop.xlane.xlu0 %187
    %v189 = vrot.slane %v188, 4
    %v190 = vadd.f32 %v188, %v189
    %v191 = vrot.slane %v190, 2
    %v192 = vadd.f32 %v190, %v191
    %v193 = vrot.slane %v192, 1
    %v194 = vadd.f32 %v192, %v193
    %v195 = vmax.f32 %v194, 1e-24
    %v196 = vrsqrt.pop %v195
    %v197 = vmul.f32 %v196, %v195
    %v198 = vmul.f32 %v197, %v196
    %v199 = vmul.f32 0.5, %v198
    %v200 = vsub.f32 1.5, %v199
    %v201 = vmul.f32 %v196, %v200
    %vm202 = vweird.f32 %v195
    %vm203 = vweird.f32 %v196
    %vm204 = vmor %vm202, %vm203
    %v205 = vsel %vm204, %v196, %v201
    %v206 = vmul.f32 %v184, %v205
    %v208 = vrot.slane %v206, 1
    %v209 = vsel %vm91, %v208, 0
    %211 = vmatpush.msra.mxu0 0.0
    %212 = vmatpush.msra.mxu0 0.0
    %213 = vmatpush.msra.mxu0 0.0
    %214 = vmatpush.msra.mxu0 0.0
    %215 = vmatpush.msra.mxu0 0.0
    %216 = vmatpush.msra.mxu0 0.0
    %217 = vmatpush.msra.mxu0 0.0
    %218 = vmatpush.msra.mxu0 0.0
    %219 = vmatpush.msra.mxu0 0.0
    %220 = vmatpush.msra.mxu0 0.0
    %221 = vmatpush.msra.mxu0 0.0
    %222 = vmatpush.msra.mxu0 0.0
    %223 = vmatpush.msra.mxu0 0.0
    %224 = vmatpush.msra.mxu0 0.0
    %225 = vmatpush.msra.mxu0 %v34
    %226 = vmatpush.msra.mxu0 %v33
    %227 = vmatmul.f32.gmra.mxu0 %v209
    %v228 = vpop.f32.mrf.mxu0
    %v229 = vadd.f32 0.0, %v228
    %230 = vdwg.mxu0
    %v231 = vsel %vm91, %v206, 0
    %233 = vmatpush.msra.mxu0 0.0
    %234 = vmatpush.msra.mxu0 0.0
    %235 = vmatpush.msra.mxu0 0.0
    %236 = vmatpush.msra.mxu0 0.0
    %237 = vmatpush.msra.mxu0 0.0
    %238 = vmatpush.msra.mxu0 0.0
    %239 = vmatpush.msra.mxu0 0.0
    %240 = vmatpush.msra.mxu0 0.0
    %241 = vmatpush.msra.mxu0 0.0
    %242 = vmatpush.msra.mxu0 0.0
    %243 = vmatpush.msra.mxu0 0.0
    %244 = vmatpush.msra.mxu0 0.0
    %245 = vmatpush.msra.mxu0 0.0
    %246 = vmatpush.msra.mxu0 0.0
    %247 = vmatpush.msra.mxu0 %v32
    %248 = vmatpush.msra.mxu0 %v31
    %249 = vmatmul.f32.gmra.mxu0 %v231
    %v250 = vpop.f32.mrf.mxu0
    %v251 = vadd.f32 %v229, %v250
    %252 = vdwg.mxu0
    %v253 = vrot.slane %v206, 2
    %v254 = vsel %vm91, %v253, 0
    %256 = vmatpush.msra.mxu0 0.0
    %257 = vmatpush.msra.mxu0 0.0
    %258 = vmatpush.msra.mxu0 0.0
    %259 = vmatpush.msra.mxu0 0.0
    %260 = vmatpush.msra.mxu0 0.0
    %261 = vmatpush.msra.mxu0 0.0
    %262 = vmatpush.msra.mxu0 0.0
    %263 = vmatpush.msra.mxu0 0.0
    %264 = vmatpush.msra.mxu0 0.0
    %265 = vmatpush.msra.mxu0 0.0
    %266 = vmatpush.msra.mxu0 0.0
    %267 = vmatpush.msra.mxu0 0.0
    %268 = vmatpush.msra.mxu0 0.0
    %269 = vmatpush.msra.mxu0 0.0
    %270 = vmatpush.msra.mxu0 %v36
    %271 = vmatpush.msra.mxu0 %v35
    %272 = vmatmul.f32.gmra.mxu0 %v254
    %v273 = vpop.f32.mrf.mxu0
    %v274 = vadd.f32 0.0, %v273
    %275 = vdwg.mxu0
    %v276 = vadd.f32 %v251, %v274
    %v277 = vrot.slane %v206, 3
    %v278 = vsel %vm91, %v277, 0
    %280 = vmatpush.msra.mxu0 0.0
    %281 = vmatpush.msra.mxu0 0.0
    %282 = vmatpush.msra.mxu0 0.0
    %283 = vmatpush.msra.mxu0 0.0
    %284 = vmatpush.msra.mxu0 0.0
    %285 = vmatpush.msra.mxu0 0.0
    %286 = vmatpush.msra.mxu0 0.0
    %287 = vmatpush.msra.mxu0 0.0
    %288 = vmatpush.msra.mxu0 0.0
    %289 = vmatpush.msra.mxu0 0.0
    %290 = vmatpush.msra.mxu0 0.0
    %291 = vmatpush.msra.mxu0 0.0
    %292 = vmatpush.msra.mxu0 0.0
    %293 = vmatpush.msra.mxu0 0.0
    %294 = vmatpush.msra.mxu0 %v38
    %295 = vmatpush.msra.mxu0 %v37
    %296 = vmatmul.f32.gmra.mxu0 %v278
    %v297 = vpop.f32.mrf.mxu0
    %v298 = vadd.f32 0.0, %v297
    %299 = vdwg.mxu0
    %v300 = vadd.f32 %v276, %v298
    %v301 = vrot.slane %v206, 4
    %v302 = vsel %vm91, %v301, 0
    %304 = vmatpush.msra.mxu0 0.0
    %305 = vmatpush.msra.mxu0 0.0
    %306 = vmatpush.msra.mxu0 0.0
    %307 = vmatpush.msra.mxu0 0.0
    %308 = vmatpush.msra.mxu0 0.0
    %309 = vmatpush.msra.mxu0 0.0
    %310 = vmatpush.msra.mxu0 0.0
    %311 = vmatpush.msra.mxu0 0.0
    %312 = vmatpush.msra.mxu0 0.0
    %313 = vmatpush.msra.mxu0 0.0
    %314 = vmatpush.msra.mxu0 0.0
    %315 = vmatpush.msra.mxu0 0.0
    %316 = vmatpush.msra.mxu0 0.0
    %317 = vmatpush.msra.mxu0 0.0
    %318 = vmatpush.msra.mxu0 %v40
    %319 = vmatpush.msra.mxu0 %v39
    %320 = vmatmul.f32.gmra.mxu0 %v302
    %v321 = vpop.f32.mrf.mxu0
    %v322 = vadd.f32 0.0, %v321
    %323 = vdwg.mxu0
    %v324 = vadd.f32 %v300, %v322
    %v325 = vrot.slane %v206, 5
    %v326 = vsel %vm91, %v325, 0
    %328 = vmatpush.msra.mxu0 0.0
    %329 = vmatpush.msra.mxu0 0.0
    %330 = vmatpush.msra.mxu0 0.0
    %331 = vmatpush.msra.mxu0 0.0
    %332 = vmatpush.msra.mxu0 0.0
    %333 = vmatpush.msra.mxu0 0.0
    %334 = vmatpush.msra.mxu0 0.0
    %335 = vmatpush.msra.mxu0 0.0
    %336 = vmatpush.msra.mxu0 0.0
    %337 = vmatpush.msra.mxu0 0.0
    %338 = vmatpush.msra.mxu0 0.0
    %339 = vmatpush.msra.mxu0 0.0
    %340 = vmatpush.msra.mxu0 0.0
    %341 = vmatpush.msra.mxu0 0.0
    %342 = vmatpush.msra.mxu0 %v42
    %343 = vmatpush.msra.mxu0 %v41
    %344 = vmatmul.f32.gmra.mxu0 %v326
    %v345 = vpop.f32.mrf.mxu0
    %v346 = vadd.f32 0.0, %v345
    %347 = vdwg.mxu0
    %v348 = vadd.f32 %v324, %v346
    %v349 = vrot.slane %v206, 6
    %v350 = vsel %vm91, %v349, 0
    %352 = vmatpush.msra.mxu0 0.0
    %353 = vmatpush.msra.mxu0 0.0
    %354 = vmatpush.msra.mxu0 0.0
    %355 = vmatpush.msra.mxu0 0.0
    %356 = vmatpush.msra.mxu0 0.0
    %357 = vmatpush.msra.mxu0 0.0
    %358 = vmatpush.msra.mxu0 0.0
    %359 = vmatpush.msra.mxu0 0.0
    %360 = vmatpush.msra.mxu0 0.0
    %361 = vmatpush.msra.mxu0 0.0
    %362 = vmatpush.msra.mxu0 0.0
    %363 = vmatpush.msra.mxu0 0.0
    %364 = vmatpush.msra.mxu0 0.0
    %365 = vmatpush.msra.mxu0 0.0
    %366 = vmatpush.msra.mxu0 %v44
    %367 = vmatpush.msra.mxu0 %v43
    %368 = vmatmul.f32.gmra.mxu0 %v350
    %v369 = vpop.f32.mrf.mxu0
    %v370 = vadd.f32 0.0, %v369
    %371 = vdwg.mxu0
    %v372 = vadd.f32 %v348, %v370
    %v373 = vrot.slane %v206, 7
    %v374 = vsel %vm91, %v373, 0
    %376 = vmatpush.msra.mxu0 0.0
    %377 = vmatpush.msra.mxu0 0.0
    %378 = vmatpush.msra.mxu0 0.0
    %379 = vmatpush.msra.mxu0 0.0
    %380 = vmatpush.msra.mxu0 0.0
    %381 = vmatpush.msra.mxu0 0.0
    %382 = vmatpush.msra.mxu0 0.0
    %383 = vmatpush.msra.mxu0 0.0
    %384 = vmatpush.msra.mxu0 0.0
    %385 = vmatpush.msra.mxu0 0.0
    %386 = vmatpush.msra.mxu0 0.0
    %387 = vmatpush.msra.mxu0 0.0
    %388 = vmatpush.msra.mxu0 0.0
    %389 = vmatpush.msra.mxu0 0.0
    %390 = vmatpush.msra.mxu0 %v46
    %391 = vmatpush.msra.mxu0 %v45
    %392 = vmatmul.f32.gmra.mxu0 %v374
    %v393 = vpop.f32.mrf.mxu0
    %v394 = vadd.f32 0.0, %v393
    %395 = vdwg.mxu0
    %v396 = vadd.f32 %v372, %v394
    %vm397 = vcmask 253952
    %398 = vst.msk [vmem:[#allocation2] sm:$0x1] %vm397, %v396
    %s399 = scalar_lea.vmem %s0, 16
    %v400 = vld [vmem:[%s399] sm:$0xff]
    %v401 = vld [vmem:[%s399 + $0x8] sm:$0xff]
    %402 = vmatpush.msra.mxu0 0.0
    %403 = vmatpush.msra.mxu0 0.0
    %404 = vmatpush.msra.mxu0 0.0
    %405 = vmatpush.msra.mxu0 0.0
    %406 = vmatpush.msra.mxu0 0.0
    %407 = vmatpush.msra.mxu0 0.0
    %408 = vmatpush.msra.mxu0 0.0
    %409 = vmatpush.msra.mxu0 0.0
    %410 = vmatpush.msra.mxu0 0.0
    %411 = vmatpush.msra.mxu0 0.0
    %412 = vmatpush.msra.mxu0 0.0
    %413 = vmatpush.msra.mxu0 0.0
    %414 = vmatpush.msra.mxu0 0.0
    %415 = vmatpush.msra.mxu0 0.0
    %416 = vmatpush.msra.mxu0 %v401
    %417 = vmatpush.msra.mxu0 %v400
    %418 = vmatmul.f32.gmra.mxu0 %v93
    %v419 = vpop.f32.mrf.mxu0
    %v420 = vadd.f32 %v57, %v419
    %421 = vdwg.mxu0
    %v422 = vsel %vm115, %v420, -inf
    %v423 = vrot.slane %v422, 4
    %v424 = vmax.f32 %v422, %v423
    %v425 = vrot.slane %v424, 2
    %v426 = vmax.f32 %v424, %v425
    %v427 = vrot.slane %v426, 1
    %v428 = vmax.f32 %v426, %v427
    %v429 = vsub.f32 %v420, %v428
    %v430 = vmul.f32 %v429, 1.442695
    %v431 = vpow.pop %v430
    %v432 = vsel %vm115, %v431, 0.0
    %v433 = vrot.slane %v432, 4
    %v434 = vadd.f32 %v432, %v433
    %v435 = vrot.slane %v434, 2
    %v436 = vadd.f32 %v434, %v435
    %v437 = vrot.slane %v436, 1
    %v438 = vadd.f32 %v436, %v437
    %v439 = vrcp.pop %v438
    %v440 = vmul.f32 %v431, %v439
    %v441 = vsel %vm115, %v440, 0.0
    %442 = vadd.xlane.f32.xlu0 %v441
    %v443 = vpop.xlane.xlu0 %442
    %v444 = vmul.f32 %v443, %v30
    %v446 = vsel %vm115, %v440, 0
    %v449 = vsel %vm115, %v400, 0
    %v452 = vsel %vm115, %v401, 0
    %454 = vmatpush.xpose.msra.mxu0 0.0
    %455 = vmatpush.xpose.msra.mxu0 0.0
    %456 = vmatpush.xpose.msra.mxu0 0.0
    %457 = vmatpush.xpose.msra.mxu0 0.0
    %458 = vmatpush.xpose.msra.mxu0 0.0
    %459 = vmatpush.xpose.msra.mxu0 0.0
    %460 = vmatpush.xpose.msra.mxu0 0.0
    %461 = vmatpush.xpose.msra.mxu0 0.0
    %462 = vmatpush.xpose.msra.mxu0 0.0
    %463 = vmatpush.xpose.msra.mxu0 0.0
    %464 = vmatpush.xpose.msra.mxu0 0.0
    %465 = vmatpush.xpose.msra.mxu0 0.0
    %466 = vmatpush.xpose.msra.mxu0 0.0
    %467 = vmatpush.xpose.msra.mxu0 0.0
    %468 = vmatpush.xpose.msra.mxu0 %v452
    %469 = vmatpush.xpose.msra.mxu0 %v449
    %470 = vmatmul.f32.gmra.mxu0 %v446
    %v471 = vpop.f32.mrf.mxu0
    %v472 = vadd.f32 0.0, %v471
    %473 = vdwg.mxu0
    %v474 = vsub.f32 %v472, %v444
    %v475 = vmul.f32 %v474, %v474
    %v476 = vsel %vm91, %v475, 0.0
    %477 = vadd.xlane.f32.xlu0 %v476
    %v478 = vpop.xlane.xlu0 %477
    %v479 = vmax.f32 %v478, 1e-24
    %v480 = vrsqrt.pop %v479
    %v481 = vmul.f32 %v480, %v479
    %v482 = vmul.f32 %v481, %v480
    %v483 = vmul.f32 0.5, %v482
    %v484 = vsub.f32 1.5, %v483
    %v485 = vmul.f32 %v480, %v484
    %vm486 = vweird.f32 %v479
    %vm487 = vweird.f32 %v480
    %vm488 = vmor %vm486, %vm487
    %v489 = vsel %vm488, %v480, %v485
    %v490 = vmul.f32 %v474, %v489
    %v491 = vmul.f32 %v490, %v490
    %v492 = vsel %vm91, %v491, 0.0
    %493 = vadd.xlane.f32.xlu0 %v492
    %v494 = vpop.xlane.xlu0 %493
    %v495 = vrot.slane %v494, 4
    %v496 = vadd.f32 %v494, %v495
    %v497 = vrot.slane %v496, 2
    %v498 = vadd.f32 %v496, %v497
    %v499 = vrot.slane %v498, 1
    %v500 = vadd.f32 %v498, %v499
    %v501 = vmax.f32 %v500, 1e-24
    %v502 = vrsqrt.pop %v501
    %v503 = vmul.f32 %v502, %v501
    %v504 = vmul.f32 %v503, %v502
    %v505 = vmul.f32 0.5, %v504
    %v506 = vsub.f32 1.5, %v505
    %v507 = vmul.f32 %v502, %v506
    %vm508 = vweird.f32 %v501
    %vm509 = vweird.f32 %v502
    %vm510 = vmor %vm508, %vm509
    %v511 = vsel %vm510, %v502, %v507
    %v512 = vmul.f32 %v490, %v511
    %v514 = vrot.slane %v512, 1
    %v515 = vsel %vm91, %v514, 0
    %517 = vmatpush.msra.mxu0 0.0
    %518 = vmatpush.msra.mxu0 0.0
    %519 = vmatpush.msra.mxu0 0.0
    %520 = vmatpush.msra.mxu0 0.0
    %521 = vmatpush.msra.mxu0 0.0
    %522 = vmatpush.msra.mxu0 0.0
    %523 = vmatpush.msra.mxu0 0.0
    %524 = vmatpush.msra.mxu0 0.0
    %525 = vmatpush.msra.mxu0 0.0
    %526 = vmatpush.msra.mxu0 0.0
    %527 = vmatpush.msra.mxu0 0.0
    %528 = vmatpush.msra.mxu0 0.0
    %529 = vmatpush.msra.mxu0 0.0
    %530 = vmatpush.msra.mxu0 0.0
    %531 = vmatpush.msra.mxu0 %v34
    %532 = vmatpush.msra.mxu0 %v33
    %533 = vmatmul.f32.gmra.mxu0 %v515
    %v534 = vpop.f32.mrf.mxu0
    %v535 = vadd.f32 0.0, %v534
    %536 = vdwg.mxu0
    %v537 = vsel %vm91, %v512, 0
    %539 = vmatpush.msra.mxu0 0.0
    %540 = vmatpush.msra.mxu0 0.0
    %541 = vmatpush.msra.mxu0 0.0
    %542 = vmatpush.msra.mxu0 0.0
    %543 = vmatpush.msra.mxu0 0.0
    %544 = vmatpush.msra.mxu0 0.0
    %545 = vmatpush.msra.mxu0 0.0
    %546 = vmatpush.msra.mxu0 0.0
    %547 = vmatpush.msra.mxu0 0.0
    %548 = vmatpush.msra.mxu0 0.0
    %549 = vmatpush.msra.mxu0 0.0
    %550 = vmatpush.msra.mxu0 0.0
    %551 = vmatpush.msra.mxu0 0.0
    %552 = vmatpush.msra.mxu0 0.0
    %553 = vmatpush.msra.mxu0 %v32
    %554 = vmatpush.msra.mxu0 %v31
    %555 = vmatmul.f32.gmra.mxu0 %v537
    %v556 = vpop.f32.mrf.mxu0
    %v557 = vadd.f32 %v535, %v556
    %558 = vdwg.mxu0
    %v559 = vrot.slane %v512, 2
    %v560 = vsel %vm91, %v559, 0
    %562 = vmatpush.msra.mxu0 0.0
    %563 = vmatpush.msra.mxu0 0.0
    %564 = vmatpush.msra.mxu0 0.0
    %565 = vmatpush.msra.mxu0 0.0
    %566 = vmatpush.msra.mxu0 0.0
    %567 = vmatpush.msra.mxu0 0.0
    %568 = vmatpush.msra.mxu0 0.0
    %569 = vmatpush.msra.mxu0 0.0
    %570 = vmatpush.msra.mxu0 0.0
    %571 = vmatpush.msra.mxu0 0.0
    %572 = vmatpush.msra.mxu0 0.0
    %573 = vmatpush.msra.mxu0 0.0
    %574 = vmatpush.msra.mxu0 0.0
    %575 = vmatpush.msra.mxu0 0.0
    %576 = vmatpush.msra.mxu0 %v36
    %577 = vmatpush.msra.mxu0 %v35
    %578 = vmatmul.f32.gmra.mxu0 %v560
    %v579 = vpop.f32.mrf.mxu0
    %v580 = vadd.f32 0.0, %v579
    %581 = vdwg.mxu0
    %v582 = vadd.f32 %v557, %v580
    %v583 = vrot.slane %v512, 3
    %v584 = vsel %vm91, %v583, 0
    %586 = vmatpush.msra.mxu0 0.0
    %587 = vmatpush.msra.mxu0 0.0
    %588 = vmatpush.msra.mxu0 0.0
    %589 = vmatpush.msra.mxu0 0.0
    %590 = vmatpush.msra.mxu0 0.0
    %591 = vmatpush.msra.mxu0 0.0
    %592 = vmatpush.msra.mxu0 0.0
    %593 = vmatpush.msra.mxu0 0.0
    %594 = vmatpush.msra.mxu0 0.0
    %595 = vmatpush.msra.mxu0 0.0
    %596 = vmatpush.msra.mxu0 0.0
    %597 = vmatpush.msra.mxu0 0.0
    %598 = vmatpush.msra.mxu0 0.0
    %599 = vmatpush.msra.mxu0 0.0
    %600 = vmatpush.msra.mxu0 %v38
    %601 = vmatpush.msra.mxu0 %v37
    %602 = vmatmul.f32.gmra.mxu0 %v584
    %v603 = vpop.f32.mrf.mxu0
    %v604 = vadd.f32 0.0, %v603
    %605 = vdwg.mxu0
    %v606 = vadd.f32 %v582, %v604
    %v607 = vrot.slane %v512, 4
    %v608 = vsel %vm91, %v607, 0
    %610 = vmatpush.msra.mxu0 0.0
    %611 = vmatpush.msra.mxu0 0.0
    %612 = vmatpush.msra.mxu0 0.0
    %613 = vmatpush.msra.mxu0 0.0
    %614 = vmatpush.msra.mxu0 0.0
    %615 = vmatpush.msra.mxu0 0.0
    %616 = vmatpush.msra.mxu0 0.0
    %617 = vmatpush.msra.mxu0 0.0
    %618 = vmatpush.msra.mxu0 0.0
    %619 = vmatpush.msra.mxu0 0.0
    %620 = vmatpush.msra.mxu0 0.0
    %621 = vmatpush.msra.mxu0 0.0
    %622 = vmatpush.msra.mxu0 0.0
    %623 = vmatpush.msra.mxu0 0.0
    %624 = vmatpush.msra.mxu0 %v40
    %625 = vmatpush.msra.mxu0 %v39
    %626 = vmatmul.f32.gmra.mxu0 %v608
    %v627 = vpop.f32.mrf.mxu0
    %v628 = vadd.f32 0.0, %v627
    %629 = vdwg.mxu0
    %v630 = vadd.f32 %v606, %v628
    %v631 = vrot.slane %v512, 5
    %v632 = vsel %vm91, %v631, 0
    %634 = vmatpush.msra.mxu0 0.0
    %635 = vmatpush.msra.mxu0 0.0
    %636 = vmatpush.msra.mxu0 0.0
    %637 = vmatpush.msra.mxu0 0.0
    %638 = vmatpush.msra.mxu0 0.0
    %639 = vmatpush.msra.mxu0 0.0
    %640 = vmatpush.msra.mxu0 0.0
    %641 = vmatpush.msra.mxu0 0.0
    %642 = vmatpush.msra.mxu0 0.0
    %643 = vmatpush.msra.mxu0 0.0
    %644 = vmatpush.msra.mxu0 0.0
    %645 = vmatpush.msra.mxu0 0.0
    %646 = vmatpush.msra.mxu0 0.0
    %647 = vmatpush.msra.mxu0 0.0
    %648 = vmatpush.msra.mxu0 %v42
    %649 = vmatpush.msra.mxu0 %v41
    %650 = vmatmul.f32.gmra.mxu0 %v632
    %v651 = vpop.f32.mrf.mxu0
    %v652 = vadd.f32 0.0, %v651
    %653 = vdwg.mxu0
    %v654 = vadd.f32 %v630, %v652
    %v655 = vrot.slane %v512, 6
    %v656 = vsel %vm91, %v655, 0
    %658 = vmatpush.msra.mxu0 0.0
    %659 = vmatpush.msra.mxu0 0.0
    %660 = vmatpush.msra.mxu0 0.0
    %661 = vmatpush.msra.mxu0 0.0
    %662 = vmatpush.msra.mxu0 0.0
    %663 = vmatpush.msra.mxu0 0.0
    %664 = vmatpush.msra.mxu0 0.0
    %665 = vmatpush.msra.mxu0 0.0
    %666 = vmatpush.msra.mxu0 0.0
    %667 = vmatpush.msra.mxu0 0.0
    %668 = vmatpush.msra.mxu0 0.0
    %669 = vmatpush.msra.mxu0 0.0
    %670 = vmatpush.msra.mxu0 0.0
    %671 = vmatpush.msra.mxu0 0.0
    %672 = vmatpush.msra.mxu0 %v44
    %673 = vmatpush.msra.mxu0 %v43
    %674 = vmatmul.f32.gmra.mxu0 %v656
    %v675 = vpop.f32.mrf.mxu0
    %v676 = vadd.f32 0.0, %v675
    %677 = vdwg.mxu0
    %v678 = vadd.f32 %v654, %v676
    %v679 = vrot.slane %v512, 7
    %v680 = vsel %vm91, %v679, 0
    %682 = vmatpush.msra.mxu0 0.0
    %683 = vmatpush.msra.mxu0 0.0
    %684 = vmatpush.msra.mxu0 0.0
    %685 = vmatpush.msra.mxu0 0.0
    %686 = vmatpush.msra.mxu0 0.0
    %687 = vmatpush.msra.mxu0 0.0
    %688 = vmatpush.msra.mxu0 0.0
    %689 = vmatpush.msra.mxu0 0.0
    %690 = vmatpush.msra.mxu0 0.0
    %691 = vmatpush.msra.mxu0 0.0
    %692 = vmatpush.msra.mxu0 0.0
    %693 = vmatpush.msra.mxu0 0.0
    %694 = vmatpush.msra.mxu0 0.0
    %695 = vmatpush.msra.mxu0 0.0
    %696 = vmatpush.msra.mxu0 %v46
    %697 = vmatpush.msra.mxu0 %v45
    %698 = vmatmul.f32.gmra.mxu0 %v680
    %v699 = vpop.f32.mrf.mxu0
    %v700 = vadd.f32 0.0, %v699
    %701 = vdwg.mxu0
    %v702 = vadd.f32 %v678, %v700
    %703 = vst.msk [vmem:[#allocation2 + $0x1] sm:$0x1] %vm397, %v702
    %v704 = vld [vmem:[#allocation2] sm:$0x3]
    %v706 = vperm.slane %v51, 0
    %v709 = vsel %vm115, %v704, 0
    %711 = vmatpush.msra.mxu0 0.0
    %712 = vmatpush.msra.mxu0 0.0
    %713 = vmatpush.msra.mxu0 0.0
    %714 = vmatpush.msra.mxu0 0.0
    %715 = vmatpush.msra.mxu0 0.0
    %716 = vmatpush.msra.mxu0 0.0
    %717 = vmatpush.msra.mxu0 0.0
    %718 = vmatpush.msra.mxu0 0.0
    %719 = vmatpush.msra.mxu0 0.0
    %720 = vmatpush.msra.mxu0 0.0
    %721 = vmatpush.msra.mxu0 0.0
    %722 = vmatpush.msra.mxu0 0.0
    %723 = vmatpush.msra.mxu0 %v50
    %724 = vmatpush.msra.mxu0 %v49
    %725 = vmatpush.msra.mxu0 %v48
    %726 = vmatpush.msra.mxu0 %v47
    %727 = vmatmul.f32.gmra.mxu0 %v709
    %v728 = vpop.f32.mrf.mxu0
    %v729 = vadd.f32 %v706, %v728
    %730 = vdwg.mxu0
    %v731 = vsub.f32 0.0, %v729
    %v732 = vmul.f32 %v731, 1.442695
    %v733 = vpow.pop %v732
    %v734 = vadd.f32 %v733, 1.0
    %v735 = vrcp.pop %v734
    %v736 = vmul.f32 %v704, %v735
    %v737 = vmul.f32 %v736, %v736
    %vm738 = vcmask 254976
    %v739 = vsel %vm738, %v737, 0.0
    %740 = vadd.xlane.f32.xlu0 %v739
    %v741 = vpop.xlane.xlu0 %740
    %v742 = vmax.f32 %v741, 1e-24
    %v743 = vrsqrt.pop %v742
    %v744 = vmul.f32 %v743, %v742
    %v745 = vmul.f32 %v744, %v743
    %v746 = vmul.f32 0.5, %v745
    %v747 = vsub.f32 1.5, %v746
    %v748 = vmul.f32 %v743, %v747
    %vm749 = vweird.f32 %v742
    %vm750 = vweird.f32 %v743
    %vm751 = vmor %vm749, %vm750
    %v752 = vsel %vm751, %v743, %v748
    %v753 = vmul.f32 %v736, %v752
    %754 = vst.msk [vmem:[#allocation2] sm:$0x3] %vm738, %v753
    // Predicated region
    $region30: #{netvlad_loupe_forward.1} parent=1 // pred_check
      _
    $region31: #{netvlad_loupe_forward.1} parent=1 // pred_check_branch
      %756 = sbr.rel (0) target = $region33
    $region32: #{netvlad_loupe_forward.1} parent=1 // pred_region
      %758 = vsyncadd [#allocation3], 0
      %s760 = sshll.u32 [#allocation2], 4
      %s761 = int_to_ptr.vmem [resolvable:$true] %s760
      %s762 = sshll.u32 %s7, 4
      %s763 = int_to_ptr.hbm [resolvable:$true] %s762
      %765 = dma.vmem_to_hbm [thread:$0]  %s761, 32, %s763, [#allocation3]
    $region33: #{netvlad_loupe_forward.1} parent=1 // pred_fallthru
      _
    // Predicated region
    $region34: #{netvlad_loupe_forward.1} parent=1 // pred_check
      _
    $region35: #{netvlad_loupe_forward.1} parent=1 // pred_check_branch
      %767 = sbr.rel (0) target = $region37
    $region36: #{netvlad_loupe_forward.1} parent=1 // pred_region
      %769 = dma.done [#allocation3], 32
    $region37: #{netvlad_loupe_forward.1} parent=1 // pred_fallthru
      _
    %770 = vsyncpa [#allocation3], 1

</llo_original>
